<compile_context>
chip_gen: v7x
topology: tpu7x:2x2x1
jax: 0.10.0
libtpu: 0.0.40
codegen_flags: <defaults>
</compile_context>

<pallas_src>
import functools

import jax
import jax.numpy as jnp
import numpy as np
from jax.experimental import pallas as pl
from jax.experimental.pallas import tpu as pltpu

OFFSET = -1          # var_format != 'target-side-pointer2' -> strict lower tri
LEAKY_SLOPE = 0.01   # nn.LeakyReLU default negative_slope


def _leaky_relu(x):
    return jnp.where(x > 0, x, LEAKY_SLOPE * x)


def _round_up(x, m):
    return ((x + m - 1) // m) * m


def aligner_kernel(mixw_ref, dec_ref, wcat_ref, bcat_ref, wbil_ref,
                   out_ref, dec_acc,
                   *, hidden_pad, lb_block, seq_tile, offset, compute_dtype):
    """One (batch q, layer-block lb) grid step.

    grid = (Q, L // lb_block); the layer-block axis ("arbitrary", innermost)
    accumulates the ScalarMix into the VMEM scratch `dec_acc` (one store per
    step, not per layer); projections + bilinear + mask run once per q at the
    last layer block (output block is resident across that axis).

    dec_ref  : (Lb, S, D)  lb_block layers of decoder states, batch element q
    wcat_ref : (D, 2Hp)    [w_src | w_tgt] (x @ W layout, compute dtype)
    bcat_ref : (1, 2Hp)    [b_src | b_tgt]
    wbil_ref : (Hp, Hp)    bilinear weight (compute dtype)
    out_ref  : (S, S)      aligned[b, a]; upper part (a > b + offset) = -inf
    dec_acc  : (S, D)      f32 ScalarMix accumulator (VMEM scratch)
    """
    lb = pl.program_id(1)
    num_lb = pl.num_programs(1)
    base = lb * lb_block

    # ---- ScalarMix partial sum over this block of Lb layers (f32 accum).
    local = mixw_ref[base] * dec_ref[0].astype(jnp.float32)
    for i in range(1, lb_block):
        local = local + mixw_ref[base + i] * dec_ref[i].astype(jnp.float32)

    @pl.when(lb == 0)
    def _():
        dec_acc[...] = local

    @pl.when(lb != 0)
    def _():
        dec_acc[...] += local

    # ---- last layer block: fused projection, tiled bilinear, tril mask.
    @pl.when(lb == num_lb - 1)
    def _():
        Hp = hidden_pad
        S = out_ref.shape[0]
        T = seq_tile
        n_t = S // T

        dec = dec_acc[...].astype(compute_dtype)

        # Fused src/tgt projection: one (S,D)@(D,2Hp) MXU pass + LeakyReLU.
        h_cat = _leaky_relu(
            jnp.dot(dec, wcat_ref[...], preferred_element_type=jnp.float32)
            + bcat_ref[...])
        h1 = h_cat[:, :Hp].astype(compute_dtype)   # src proj (lane-aligned split)
        h2 = h_cat[:, Hp:].astype(compute_dtype)   # tgt proj

        neg_inf_tile = jnp.full((T, T), -jnp.inf, dtype=out_ref.dtype)

        # Tiled bilinear form; tiles entirely above the diagonal skip all
        # matmuls (statically) and are just filled with -inf.
        for at in range(n_t):
            a0 = at * T
            any_kept = any(a0 <= bt * T + T - 1 + offset for bt in range(n_t))
            if any_kept:
                # m[a, y] = sum_x h1[a, x] * W[x, y]  (this a-tile only)
                m_a = jnp.dot(h1[a0:a0 + T, :], wbil_ref[...],
                              preferred_element_type=jnp.float32)
                m_a = m_a.astype(compute_dtype)
            for bt in range(n_t):
                b0 = bt * T
                if a0 > b0 + T - 1 + offset:
                    out_ref[pl.ds(b0, T), pl.ds(a0, T)] = neg_inf_tile
                    continue
                # aligned[b, a] = sum_y h2[b, y] * m[a, y]: contract the last
                # dims of both operands (no explicit transpose of the big
                # (T,Hp) tiles; only the MXU handles the NT orientation).
                tile = jax.lax.dot_general(
                    h2[b0:b0 + T, :], m_a,
                    dimension_numbers=(((1,), (1,)), ((), ())),
                    preferred_element_type=jnp.float32)
                if a0 + T - 1 > b0 + offset:
                    # tile intersects the diagonal -> per-element tril mask
                    b_idx = jax.lax.broadcasted_iota(jnp.int32, (T, T), 0) + b0
                    a_idx = jax.lax.broadcasted_iota(jnp.int32, (T, T), 1) + a0
                    tile = jnp.where(a_idx <= b_idx + offset, tile, -jnp.inf)
                out_ref[pl.ds(b0, T), pl.ds(a0, T)] = tile.astype(out_ref.dtype)


def bilinear_aligner(dec_layers, scalar_params, gamma,
                     w_src, b_src, w_tgt, b_tgt, w_bilinear,
                     *, use_bf16=True, lb_target=4):
    """dec_layers: (L, Q, S, D).  Returns aligned: (Q, S, S) float32."""
    L, Q, S, D = dec_layers.shape
    H = w_src.shape[1]
    compute_dtype = jnp.bfloat16 if use_bf16 else jnp.float32

    # ScalarMix normalized weights (tiny scalar op -> plain JAX glue).
    mix_w = (jax.nn.softmax(scalar_params) * gamma).astype(jnp.float32)

    # Pad the hidden dim to a lane-tile multiple (zero padding is exact:
    # padded h columns are leaky_relu(0)=0 and padded W rows/cols are 0),
    # so the h_cat[:, :Hp]/[:, Hp:] split lands on a 128-lane boundary.
    Hp = _round_up(H, 128)
    if Hp != H:
        cpad = ((0, 0), (0, Hp - H))
        w_src, w_tgt = jnp.pad(w_src, cpad), jnp.pad(w_tgt, cpad)
        b_src, b_tgt = jnp.pad(b_src, cpad), jnp.pad(b_tgt, cpad)
        w_bilinear = jnp.pad(w_bilinear, ((0, Hp - H), (0, Hp - H)))

    # Fused projection weights, pre-cast to the MXU operand dtype (no
    # per-q casts inside the kernel, half the resident weight bytes in bf16).
    w_cat = jnp.concatenate([w_src, w_tgt], axis=1).astype(compute_dtype)
    b_cat = jnp.concatenate([b_src, b_tgt], axis=1).astype(compute_dtype)
    w_bil = w_bilinear.astype(compute_dtype)

    if use_bf16:
        # Halves HBM traffic on the dominant (L,Q,S,D) input; the ScalarMix
        # still accumulates in f32 inside the kernel.
        dec_layers = dec_layers.astype(jnp.bfloat16)

    # Layer blocking: DMA lb_block layers per grid step (fewer grid steps,
    # bigger DMAs, one dec_acc store per step).
    lb_block = 1
    for cand in range(min(L, lb_target), 0, -1):
        if L % cand == 0:
            lb_block = cand
            break

    # Output tile used for the in-kernel triangular skip.
    seq_tile = S
    for cand in (512, 256, 128):
        if S % cand == 0:
            seq_tile = cand
            break

    kernel = functools.partial(
        aligner_kernel, hidden_pad=Hp, lb_block=lb_block, seq_tile=seq_tile,
        offset=OFFSET, compute_dtype=compute_dtype)

    # ---- VMEM budget: double-buffered dec/out blocks, single-buffered
    #      weights, accumulator scratch and the last-step intermediates,
    #      capped at 0.75x the actual chip VMEM (respects v7x's 64 MiB).
    op_sz = 2 if use_bf16 else 4
    dec_block = lb_block * S * D * op_sz
    out_block = S * S * 4
    weights = (D * 2 * Hp + 2 * Hp + Hp * Hp) * op_sz
    scratch = S * D * 4
    interm = (S * 2 * Hp * 4                 # h_cat (f32)
              + 2 * S * Hp * op_sz           # h1, h2
              + S * D * op_sz                # dec cast
              + seq_tile * Hp * (4 + op_sz)  # m tile (f32 + cast)
              + seq_tile * seq_tile * 4)     # aligned tile
    est = 2 * dec_block + 2 * out_block + weights + scratch + interm
    try:
        vmem_cap = pltpu.get_tpu_info().vmem_capacity_bytes
    except Exception:
        vmem_cap = 64 * 1024 * 1024          # conservative (v7x per-core)
    vmem_limit = int(min(max(16 * 1024 * 1024, 2 * est), (3 * vmem_cap) // 4))

    def _const_spec(shape):
        # Constant-index weight blocks: single-buffer (double-buffering is
        # pure waste since the block never changes).
        kwargs = {}
        if hasattr(pl, "Buffered"):
            kwargs["pipeline_mode"] = pl.Buffered(1)
        try:
            return pl.BlockSpec(shape, lambda q, lb: (0, 0), **kwargs)
        except TypeError:
            return pl.BlockSpec(shape, lambda q, lb: (0, 0))

    # TODO(synk): on v7x (2 TensorCores) with Q == 1 the single "parallel"
    # block leaves one core idle; split the output b-rows onto the grid there.
    # TODO(synk): on v6e (128 MiB VMEM) a deeper dec pipeline (pl.Buffered(3))
    # could stream the next q's layers behind the long last-step compute.
    return pl.pallas_call(
        kernel,
        out_shape=jax.ShapeDtypeStruct((Q, S, S), jnp.float32),
        grid_spec=pltpu.PrefetchScalarGridSpec(
            num_scalar_prefetch=0,
            grid=(Q, L // lb_block),           # reduction axis innermost
            in_specs=[
                pl.BlockSpec(memory_space=pltpu.SMEM),                 # mix_w (L,)
                pl.BlockSpec((lb_block, None, S, D),
                             lambda q, lb: (lb, q, 0, 0)),             # dec_layers
                _const_spec((D, 2 * Hp)),                              # w_cat
                _const_spec((1, 2 * Hp)),                              # b_cat
                _const_spec((Hp, Hp)),                                 # w_bilinear
            ],
            out_specs=pl.BlockSpec((None, S, S), lambda q, lb: (q, 0, 0)),
            scratch_shapes=[pltpu.VMEM((S, D), jnp.float32)],
        ),
        compiler_params=pltpu.CompilerParams(
            dimension_semantics=("parallel", "arbitrary"),
            vmem_limit_bytes=vmem_limit),
    )(mix_w, dec_layers, w_cat, b_cat, w_bil)


def reference(dec_layers, scalar_params, gamma,
              w_src, b_src, w_tgt, b_tgt, w_bilinear):
    mix_w = jax.nn.softmax(scalar_params) * gamma
    dec = jnp.einsum('l,lqsd->qsd', mix_w, dec_layers)
    h1 = _leaky_relu(dec @ w_src + b_src)
    h2 = _leaky_relu(dec @ w_tgt + b_tgt)
    aligned = jnp.einsum('qax,xy,qby->qba', h1, w_bilinear, h2)
    S = aligned.shape[-1]
    b_idx = jnp.arange(S)[:, None]
    a_idx = jnp.arange(S)[None, :]
    keep = a_idx <= (b_idx + OFFSET)
    return jnp.where(keep[None], aligned, -jnp.inf)


if __name__ == "__main__":
    # Small shapes: L bart layers, batch Q, sequence S, input D, hidden H.
    L, Q, S, D, H = 3, 2, 8, 32, 32

    key = jax.random.PRNGKey(0)
    k = jax.random.split(key, 8)

    dec_layers = jax.random.normal(k[0], (L, Q, S, D), dtype=jnp.float32)

    # Deterministic synthetic parameter init (torch zero-inits bilinear_weight
    # and scalar-mix params; we use random values for weights so the output is
    # non-trivial; scalar-mix params kept at zero like the module).
    scalar_params = jnp.zeros((L,), dtype=jnp.float32)   # ScalarMix params
    gamma = jnp.float32(1.0)                             # ScalarMix gamma
    w_src = jax.random.normal(k[1], (D, H), dtype=jnp.float32) * 0.1
    b_src = jax.random.normal(k[2], (1, H), dtype=jnp.float32) * 0.1
    w_tgt = jax.random.normal(k[3], (D, H), dtype=jnp.float32) * 0.1
    b_tgt = jax.random.normal(k[4], (1, H), dtype=jnp.float32) * 0.1
    w_bilinear = jax.random.normal(k[5], (H, H), dtype=jnp.float32) * 0.1

    ref = reference(dec_layers, scalar_params, gamma,
                    w_src, b_src, w_tgt, b_tgt, w_bilinear)

    # f32 path: exact semantics check against the pure-JAX reference.
    out_f32 = bilinear_aligner(dec_layers, scalar_params, gamma,
                               w_src, b_src, w_tgt, b_tgt, w_bilinear,
                               use_bf16=False)
    out_f32 = jax.block_until_ready(out_f32)
    assert out_f32.shape == (Q, S, S)
    assert np.allclose(np.asarray(out_f32), np.asarray(ref),
                       rtol=1e-5, atol=1e-5)

    # Default perf path: bf16 MXU operands with f32 accumulation -> looser
    # tolerance (documented correctness/perf tradeoff).
    out_bf16 = bilinear_aligner(dec_layers, scalar_params, gamma,
                                w_src, b_src, w_tgt, b_tgt, w_bilinear)
    out_bf16 = jax.block_until_ready(out_bf16)
    assert out_bf16.shape == (Q, S, S)
    assert np.allclose(np.asarray(out_bf16), np.asarray(ref),
                       rtol=5e-2, atol=5e-2)

    # TODO(synk): the is_forward=False branch's argmax->python-list pointer
    # chasing is host-side post-processing and is not part of the TPU kernel.
    print("KERNEL_OK")
</pallas_src>

<mosaic_0001>
module attributes {stable_mosaic.version = 11 : i64} {
  func.func @aligner_kernel(%arg0: i32, %arg1: i32, %arg2: memref<3xf32, #tpu.memory_space<smem>>, %arg3: memref<3x1x8x32xf32, #tpu.memory_space<vmem>>, %arg4: memref<32x256xf32, #tpu.memory_space<vmem>>, %arg5: memref<1x256xf32, #tpu.memory_space<vmem>>, %arg6: memref<128x128xf32, #tpu.memory_space<vmem>>, %arg7: memref<1x8x8xf32, #tpu.memory_space<vmem>>, %arg8: memref<8x32xf32, #tpu.memory_space<vmem>>) attributes {dimension_semantics = [#tpu.dimension_semantics<parallel>, #tpu.dimension_semantics<arbitrary>], iteration_bounds = array<i64: 2, 1>, scalar_prefetch = 0 : i64, scratch_operands = 1 : i64, tpu.core_type = #tpu.core_type<tc>, window_params = [{transform_indices = @transform_0, window_bounds = array<i64: 3>}, {transform_indices = @transform_1, window_bounds = array<i64: 3, 1, 8, 32>}, {pipeline_mode = #tpu.pipeline_mode<synchronous>, transform_indices = @transform_2, window_bounds = array<i64: 32, 256>}, {pipeline_mode = #tpu.pipeline_mode<synchronous>, transform_indices = @transform_3, window_bounds = array<i64: 1, 256>}, {pipeline_mode = #tpu.pipeline_mode<synchronous>, transform_indices = @transform_4, window_bounds = array<i64: 128, 128>}, {transform_indices = @transform_5, window_bounds = array<i64: 1, 8, 8>}]} {
    %c3_i32 = arith.constant 3 : i32
    %0 = arith.muli %arg1, %c3_i32 : i32
    %1 = arith.index_cast %0 : i32 to index
    %2 = memref.load %arg2[%1] : memref<3xf32, #tpu.memory_space<smem>>
    %c0 = arith.constant 0 : index
    %c0_0 = arith.constant 0 : index
    %c0_1 = arith.constant 0 : index
    %c0_2 = arith.constant 0 : index
    %3 = vector.load %arg3[%c0, %c0_0, %c0_1, %c0_2] : memref<3x1x8x32xf32, #tpu.memory_space<vmem>>, vector<1x1x8x32xf32>
    %4 = vector.shape_cast %3 : vector<1x1x8x32xf32> to vector<8x32xf32>
    %5 = vector.broadcast %2 : f32 to vector<8x32xf32>
    %6 = arith.mulf %5, %4 : vector<8x32xf32>
    %c1_i32 = arith.constant 1 : i32
    %7 = arith.addi %0, %c1_i32 : i32
    %8 = arith.index_cast %7 : i32 to index
    %9 = memref.load %arg2[%8] : memref<3xf32, #tpu.memory_space<smem>>
    %c1 = arith.constant 1 : index
    %c0_3 = arith.constant 0 : index
    %c0_4 = arith.constant 0 : index
    %c0_5 = arith.constant 0 : index
    %10 = vector.load %arg3[%c1, %c0_3, %c0_4, %c0_5] : memref<3x1x8x32xf32, #tpu.memory_space<vmem>>, vector<1x1x8x32xf32>
    %11 = vector.shape_cast %10 : vector<1x1x8x32xf32> to vector<8x32xf32>
    %12 = vector.broadcast %9 : f32 to vector<8x32xf32>
    %13 = arith.mulf %12, %11 : vector<8x32xf32>
    %14 = arith.addf %6, %13 : vector<8x32xf32>
    %c2_i32 = arith.constant 2 : i32
    %15 = arith.addi %0, %c2_i32 : i32
    %16 = arith.index_cast %15 : i32 to index
    %17 = memref.load %arg2[%16] : memref<3xf32, #tpu.memory_space<smem>>
    %c2 = arith.constant 2 : index
    %c0_6 = arith.constant 0 : index
    %c0_7 = arith.constant 0 : index
    %c0_8 = arith.constant 0 : index
    %18 = vector.load %arg3[%c2, %c0_6, %c0_7, %c0_8] : memref<3x1x8x32xf32, #tpu.memory_space<vmem>>, vector<1x1x8x32xf32>
    %19 = vector.shape_cast %18 : vector<1x1x8x32xf32> to vector<8x32xf32>
    %20 = vector.broadcast %17 : f32 to vector<8x32xf32>
    %21 = arith.mulf %20, %19 : vector<8x32xf32>
    %22 = arith.addf %14, %21 : vector<8x32xf32>
    %c0_i32 = arith.constant 0 : i32
    %23 = arith.cmpi eq, %arg1, %c0_i32 : i32
    %24 = arith.extui %23 : i1 to i32
    %c0_i32_9 = arith.constant 0 : i32
    %25 = arith.cmpi ne, %24, %c0_i32_9 : i32
    scf.if %25 {
      %c0_14 = arith.constant 0 : index
      %c0_15 = arith.constant 0 : index
      %32 = vector.load %arg8[%c0_14, %c0_15] : memref<8x32xf32, #tpu.memory_space<vmem>>, vector<8x32xf32>
      tpu.vector_store %arg8[%c0_14, %c0_15], %22 {strides = array<i32>} : memref<8x32xf32, #tpu.memory_space<vmem>>, vector<8x32xf32>,
    } else {
    }
    %c0_i32_10 = arith.constant 0 : i32
    %26 = arith.cmpi ne, %arg1, %c0_i32_10 : i32
    %27 = arith.extui %26 : i1 to i32
    %c0_i32_11 = arith.constant 0 : i32
    %28 = arith.cmpi ne, %27, %c0_i32_11 : i32
    scf.if %28 {
      %c0_14 = arith.constant 0 : index
      %c0_15 = arith.constant 0 : index
      %32 = vector.load %arg8[%c0_14, %c0_15] : memref<8x32xf32, #tpu.memory_space<vmem>>, vector<8x32xf32>
      %33 = arith.addf %32, %22 : vector<8x32xf32>
      %c0_16 = arith.constant 0 : index
      %c0_17 = arith.constant 0 : index
      %34 = vector.load %arg8[%c0_16, %c0_17] : memref<8x32xf32, #tpu.memory_space<vmem>>, vector<8x32xf32>
      tpu.vector_store %arg8[%c0_16, %c0_17], %33 {strides = array<i32>} : memref<8x32xf32, #tpu.memory_space<vmem>>, vector<8x32xf32>,
    } else {
    }
    %c0_i32_12 = arith.constant 0 : i32
    %29 = arith.cmpi eq, %arg1, %c0_i32_12 : i32
    %30 = arith.extui %29 : i1 to i32
    %c0_i32_13 = arith.constant 0 : i32
    %31 = arith.cmpi ne, %30, %c0_i32_13 : i32
    scf.if %31 {
      %c0_14 = arith.constant 0 : index
      %c0_15 = arith.constant 0 : index
      %32 = vector.load %arg8[%c0_14, %c0_15] : memref<8x32xf32, #tpu.memory_space<vmem>>, vector<8x32xf32>
      %c0_16 = arith.constant 0 : index
      %c0_17 = arith.constant 0 : index
      %33 = vector.load %arg4[%c0_16, %c0_17] : memref<32x256xf32, #tpu.memory_space<vmem>>, vector<32x256xf32>
      %cst = arith.constant dense<0.000000e+00> : vector<8x256xf32>
      %34 = tpu.matmul %32, %33, %cst {dimension_numbers = #tpu.dot_dimension_numbers<[1], [0], [0], [1], [0, 0, 1, 1], [], []>} : vector<8x32xf32>, vector<32x256xf32>, vector<8x256xf32> -> vector<8x256xf32>
      %c0_18 = arith.constant 0 : index
      %c0_19 = arith.constant 0 : index
      %35 = vector.load %arg5[%c0_18, %c0_19] : memref<1x256xf32, #tpu.memory_space<vmem>>, vector<1x256xf32>
      %36 = vector.broadcast %35 : vector<1x256xf32> to vector<8x256xf32>
      %37 = arith.addf %34, %36 : vector<8x256xf32>
      %cst_20 = arith.constant 0.000000e+00 : f32
      %38 = vector.broadcast %cst_20 : f32 to vector<8x256xf32>
      %39 = arith.cmpf ogt, %37, %38 : vector<8x256xf32>
      %cst_21 = arith.constant 0.00999999977 : f32
      %40 = vector.broadcast %cst_21 : f32 to vector<8x256xf32>
      %41 = arith.mulf %40, %37 : vector<8x256xf32>
      %42 = arith.select %39, %37, %41 : vector<8x256xi1>, vector<8x256xf32>
      %43 = vector.extract_strided_slice %42 {offsets = [0, 0], sizes = [8, 128], strides = [1, 1]} : vector<8x256xf32> to vector<8x128xf32>
      %44 = vector.extract_strided_slice %42 {offsets = [0, 128], sizes = [8, 128], strides = [1, 1]} : vector<8x256xf32> to vector<8x128xf32>
      %c0_22 = arith.constant 0 : index
      %c0_23 = arith.constant 0 : index
      %45 = vector.load %arg6[%c0_22, %c0_23] : memref<128x128xf32, #tpu.memory_space<vmem>>, vector<128x128xf32>
      %cst_24 = arith.constant dense<0.000000e+00> : vector<8x128xf32>
      %46 = tpu.matmul %43, %45, %cst_24 {dimension_numbers = #tpu.dot_dimension_numbers<[1], [0], [0], [1], [0, 0, 1, 1], [], []>} : vector<8x128xf32>, vector<128x128xf32>, vector<8x128xf32> -> vector<8x128xf32>
      %cst_25 = arith.constant dense<0.000000e+00> : vector<8x8xf32>
      %47 = tpu.matmul %44, %46, %cst_25 {dimension_numbers = #tpu.dot_dimension_numbers<[1], [1], [0], [0], [0, 0, 1, 0], [], []>} : vector<8x128xf32>, vector<8x128xf32>, vector<8x8xf32> -> vector<8x8xf32>
      %48 = tpu.iota {dimensions = array<i32: 0>} : vector<8x8xi32>
      %c0_i32_26 = arith.constant 0 : i32
      %49 = vector.broadcast %c0_i32_26 : i32 to vector<8x8xi32>
      %50 = arith.addi %48, %49 : vector<8x8xi32>
      %51 = tpu.iota {dimensions = array<i32: 1>} : vector<8x8xi32>
      %c0_i32_27 = arith.constant 0 : i32
      %52 = vector.broadcast %c0_i32_27 : i32 to vector<8x8xi32>
      %53 = arith.addi %51, %52 : vector<8x8xi32>
      %c-1_i32 = arith.constant -1 : i32
      %54 = vector.broadcast %c-1_i32 : i32 to vector<8x8xi32>
      %55 = arith.addi %50, %54 : vector<8x8xi32>
      %56 = arith.cmpi sle, %53, %55 : vector<8x8xi32>
      %cst_28 = arith.constant 0xFF800000 : f32
      %57 = vector.broadcast %cst_28 : f32 to vector<8x8xf32>
      %58 = arith.select %56, %47, %57 : vector<8x8xi1>, vector<8x8xf32>
      %c0_29 = arith.constant 0 : index
      %c0_30 = arith.constant 0 : index
      %c0_31 = arith.constant 0 : index
      %59 = vector.load %arg7[%c0_29, %c0_30, %c0_31] : memref<1x8x8xf32, #tpu.memory_space<vmem>>, vector<1x8x8xf32>
      %60 = vector.shape_cast %59 : vector<1x8x8xf32> to vector<8x8xf32>
      %61 = vector.shape_cast %58 : vector<8x8xf32> to vector<1x8x8xf32>
      tpu.vector_store %arg7[%c0_29, %c0_30, %c0_31], %61 {strides = array<i32>} : memref<1x8x8xf32, #tpu.memory_space<vmem>>, vector<1x8x8xf32>,
    } else {
    }
    return
  }
  func.func @transform_0(%arg0: i32, %arg1: i32) -> i32 {
    %c0_i32 = arith.constant 0 : i32
    %c0_i32_0 = arith.constant 0 : i32
    return %c0_i32 : i32
  }
  func.func @transform_1(%arg0: i32, %arg1: i32) -> (i32, i32, i32, i32) {
    %c0_i32 = arith.constant 0 : i32
    %c0_i32_0 = arith.constant 0 : i32
    %c0_i32_1 = arith.constant 0 : i32
    return %arg1, %arg0, %c0_i32, %c0_i32_0 : i32, i32, i32, i32
  }
  func.func @transform_2(%arg0: i32, %arg1: i32) -> (i32, i32) {
    %c0_i32 = arith.constant 0 : i32
    %c0_i32_0 = arith.constant 0 : i32
    %c0_i32_1 = arith.constant 0 : i32
    return %c0_i32, %c0_i32_0 : i32, i32
  }
  func.func @transform_3(%arg0: i32, %arg1: i32) -> (i32, i32) {
    %c0_i32 = arith.constant 0 : i32
    %c0_i32_0 = arith.constant 0 : i32
    %c0_i32_1 = arith.constant 0 : i32
    return %c0_i32, %c0_i32_0 : i32, i32
  }
  func.func @transform_4(%arg0: i32, %arg1: i32) -> (i32, i32) {
    %c0_i32 = arith.constant 0 : i32
    %c0_i32_0 = arith.constant 0 : i32
    %c0_i32_1 = arith.constant 0 : i32
    return %c0_i32, %c0_i32_0 : i32, i32
  }
  func.func @transform_5(%arg0: i32, %arg1: i32) -> (i32, i32, i32) {
    %c0_i32 = arith.constant 0 : i32
    %c0_i32_0 = arith.constant 0 : i32
    %c0_i32_1 = arith.constant 0 : i32
    return %arg0, %c0_i32, %c0_i32_0 : i32, i32, i32
  }
}

</mosaic_0001>

<llo_original>
// kernel: tpu_custom_call.1
$region0: #{tpu_custom_call.1}
  #allocation0 [shape = 'u32[]', space=smem, size = 0x4, offset = 0x4, fixed_abs, tag = 'smem constant byte address 0x4 - core index']
  #allocation1 [shape = 'u32[144,128]{1,0:T(1,128)}', space=vmem, size = 0x12000, scoped, tag = 'internal scratch']
  #allocation2 [shape = 'f32[8,32]{1,0:T(8,128)}', space=vmem, size = 0x1000, scoped, tag = 'scratch operand']
  %s0 = inlined_call_operand.hbm [shape: f32[3], index: 0, kind: input, shape index: {}]
  %s1 = inlined_call_operand.hbm [shape: f32[3,2,8,32], index: 1, kind: input, shape index: {}]
  %s2 = inlined_call_operand.hbm [shape: f32[32,256], index: 2, kind: input, shape index: {}]
  %s3 = inlined_call_operand.vmem [shape: f32[1,256], index: 3, kind: input, shape index: {}]
  %s4 = inlined_call_operand.hbm [shape: f32[128,128], index: 4, kind: input, shape index: {}]
  %s5 = inlined_call_operand.hbm [shape: f32[2,8,8], index: 5, kind: output, shape index: {}]
  %s6 = sld [smem:[#allocation0]]
  $region81: #{tpu_custom_call.1} parent=0
    _
  %s8 = ssub.s32 1, %s6
  %s9 = scalar_select 0, %s8, %s6
  $region1: #{tpu_custom_call.1} parent=0
    #allocation3 [shape = 'u8[512]{0}', space=smem, size = 0x200, scoped, tag = 'input window, operand 0, single buffered']
    #allocation4 [shape = 's32[2]{0}', space=sflag, size = 0x8, scoped, tag = 'scoped memory for tpu_custom_call.1']
    #allocation5 [shape = 's32[2]{0}', space=sflag, size = 0x8, scoped, tag = 'scoped memory for tpu_custom_call.1']
    #allocation6 [shape = 's32[2]{0}', space=sflag, size = 0x8, scoped, tag = 'scoped memory for tpu_custom_call.1']
    #allocation7 [shape = 'u8[24576]{0}', space=vmem, size = 0x6000, scoped, tag = 'input window, operand 1']
    #allocation8 [shape = 'u8[32768]{0}', space=vmem, size = 0x8000, scoped, tag = 'input window, operand 2, single buffered']
    #allocation9 [shape = 's32[1]{0}', space=sflag, size = 0x4, scoped, tag = 'scoped memory for tpu_custom_call.1']
    #allocation10 [shape = 'u8[65536]{0}', space=vmem, size = 0x10000, scoped, tag = 'input window, operand 4, single buffered']
    #allocation11 [shape = 'u8[8192]{0}', space=vmem, size = 0x2000, scoped, tag = 'output window, operand 0']
    %10 = vsyncpa [#allocation6], 0
    %11 = vsyncpa [#allocation4], 0
    %s12 = scalar_lea.sflag [#allocation4], 1
    %13 = vsyncpa %s12, 0
    %14 = vsyncpa [#allocation9], 0
    %15 = vsyncpa [#allocation5], 0
    %s16 = scalar_lea.sflag [#allocation5], 1
    %17 = vsyncpa %s16, 0
    loop: start=0, step=1, limit=4
    $region2: #{tpu_custom_call.1} parent=1 // loop_pre_header
      _
    $region3: #{tpu_custom_call.1} parent=1 // loop_header
      %s19 = sphi 0, %s23
      %p20 = scmp.ge.s32.totalorder %s19, 4
      %s26 = sphi 0, %s38
      %s27 = sphi 0, %s34
      %s28 = sphi 0, %s26
      %s29 = sphi 0, %s27
      %s30 = sphi 0, %s28
      %s31 = sphi 0, %s29
      %s39 = sphi 0, %s39
      %s41 = sphi 0, %s39
      %s42 = sphi 0, %s41
      %s56 = sphi 0, %s42
      %s64 = sphi 0, %s66
      %s67 = sphi 0, %s64
      %s68 = sphi 0, %s67
      %s84 = sphi 0, %s68
      %s88 = sphi 0, %s88
      %s90 = sphi 0, %s88
      %s91 = sphi 0, %s90
      %s105 = sphi 0, %s91
      %s109 = sphi 0, %s109
      %s111 = sphi 0, %s109
      %s112 = sphi 0, %s111
      %s126 = sphi 0, %s112
      %s130 = sphi 0, %s130
      %s132 = sphi 0, %s130
      %s133 = sphi 0, %s132
      %s147 = sphi 0, %s133
      %s153 = sphi 0, %s155
      %s156 = sphi 0, %s153
      %s157 = sphi 0, %s156
      %s173 = sphi 0, %s157
    $region4: #{tpu_custom_call.1} parent=1 // loop_header_branch
      %22 = sbr.rel (%p20) target = $region8
    $region5: #{tpu_custom_call.1} parent=1 // loop_body
      %s24 = ssub.s32 %s19, 1
      %s25 = ssub.s32 %s19, 2
      %s32 = sadd.s32 1, %s27
      %p33 = scmp.ge.s32.totalorder %s32, 1
      %s34 = scalar_select %p33, 0, %s32
      %s35 = sadd.s32 1, %s26
      %s36 = scalar_select %p33, %s35, %s26
      %p37 = scmp.ge.s32.totalorder %s36, 2
      %s38 = scalar_select %p37, 0, %s36
      %s40 = sadd.s32 %s39, 1
      %p43 = scmp.eq.s32.totalorder %s19, 1
      %p44 = scmp.ne.s32.totalorder %s39, %s41
      %p45 = scmp.eq.s32.totalorder %s19, 0
      %p46 = por %p44, %p45
      %p47 = scmp.ne.s32.totalorder %s39, %s41
      %p48 = scmp.eq.s32.totalorder %s24, 1
      %p49 = por %p47, %p48
      %p50 = scmp.ne.s32.totalorder %s41, %s42
      %p51 = scmp.eq.s32.totalorder %s24, 0
      %p52 = por %p50, %p51
      %p53 = scmp.ne.s32.totalorder %s41, %s42
      %p54 = scmp.eq.s32.totalorder %s25, 1
      %p55 = por %p53, %p54
      %p57 = scmp.ne.s32.totalorder %s42, %s56
      %p58 = scmp.eq.s32.totalorder %s25, 0
      %p59 = por %p57, %p58
      %s60 = ssub.s32 %s27, %s34
      %s61 = ssub.s32 %s26, %s38
      %s62 = sor.u32 %s60, %s61
      %p63 = scmp.eq.s32.totalorder %s62, 0
      %s65 = sadd.s32 %s64, 1
      %s66 = scalar_select %p63, %s64, %s65
      %p69 = pneg %p63
      %p70 = scmp.eq.s32.totalorder %s19, 1
      %p71 = por %p69, %p70
      %p72 = scmp.ne.s32.totalorder %s64, %s67
      %p73 = scmp.eq.s32.totalorder %s19, 0
      %p74 = por %p72, %p73
      %p75 = scmp.ne.s32.totalorder %s64, %s67
      %p76 = scmp.eq.s32.totalorder %s24, 1
      %p77 = por %p75, %p76
      %p78 = scmp.ne.s32.totalorder %s67, %s68
      %p79 = scmp.eq.s32.totalorder %s24, 0
      %p80 = por %p78, %p79
      %p81 = scmp.ne.s32.totalorder %s67, %s68
      %p82 = scmp.eq.s32.totalorder %s25, 1
      %p83 = por %p81, %p82
      %p85 = scmp.ne.s32.totalorder %s68, %s84
      %p86 = scmp.eq.s32.totalorder %s25, 0
      %p87 = por %p85, %p86
      %s89 = sadd.s32 %s88, 1
      %p92 = scmp.eq.s32.totalorder %s19, 1
      %p93 = scmp.ne.s32.totalorder %s88, %s90
      %p94 = scmp.eq.s32.totalorder %s19, 0
      %p95 = por %p93, %p94
      %p96 = scmp.ne.s32.totalorder %s88, %s90
      %p97 = scmp.eq.s32.totalorder %s24, 1
      %p98 = por %p96, %p97
      %p99 = scmp.ne.s32.totalorder %s90, %s91
      %p100 = scmp.eq.s32.totalorder %s24, 0
      %p101 = por %p99, %p100
      %p102 = scmp.ne.s32.totalorder %s90, %s91
      %p103 = scmp.eq.s32.totalorder %s25, 1
      %p104 = por %p102, %p103
      %p106 = scmp.ne.s32.totalorder %s91, %s105
      %p107 = scmp.eq.s32.totalorder %s25, 0
      %p108 = por %p106, %p107
      %s110 = sadd.s32 %s109, 1
      %p113 = scmp.eq.s32.totalorder %s19, 1
      %p114 = scmp.ne.s32.totalorder %s109, %s111
      %p115 = scmp.eq.s32.totalorder %s19, 0
      %p116 = por %p114, %p115
      %p117 = scmp.ne.s32.totalorder %s109, %s111
      %p118 = scmp.eq.s32.totalorder %s24, 1
      %p119 = por %p117, %p118
      %p120 = scmp.ne.s32.totalorder %s111, %s112
      %p121 = scmp.eq.s32.totalorder %s24, 0
      %p122 = por %p120, %p121
      %p123 = scmp.ne.s32.totalorder %s111, %s112
      %p124 = scmp.eq.s32.totalorder %s25, 1
      %p125 = por %p123, %p124
      %p127 = scmp.ne.s32.totalorder %s112, %s126
      %p128 = scmp.eq.s32.totalorder %s25, 0
      %p129 = por %p127, %p128
      %s131 = sadd.s32 %s130, 1
      %p134 = scmp.eq.s32.totalorder %s19, 1
      %p135 = scmp.ne.s32.totalorder %s130, %s132
      %p136 = scmp.eq.s32.totalorder %s19, 0
      %p137 = por %p135, %p136
      %p138 = scmp.ne.s32.totalorder %s130, %s132
      %p139 = scmp.eq.s32.totalorder %s24, 1
      %p140 = por %p138, %p139
      %p141 = scmp.ne.s32.totalorder %s132, %s133
      %p142 = scmp.eq.s32.totalorder %s24, 0
      %p143 = por %p141, %p142
      %p144 = scmp.ne.s32.totalorder %s132, %s133
      %p145 = scmp.eq.s32.totalorder %s25, 1
      %p146 = por %p144, %p145
      %p148 = scmp.ne.s32.totalorder %s133, %s147
      %p149 = scmp.eq.s32.totalorder %s25, 0
      %p150 = por %p148, %p149
      %s151 = ssub.s32 %s26, %s38
      %p152 = scmp.eq.s32.totalorder %s151, 0
      %s154 = sadd.s32 %s153, 1
      %s155 = scalar_select %p152, %s153, %s154
      %p158 = pneg %p152
      %p159 = scmp.eq.s32.totalorder %s19, 1
      %p160 = por %p158, %p159
      %p161 = scmp.ne.s32.totalorder %s153, %s156
      %p162 = scmp.eq.s32.totalorder %s19, 0
      %p163 = por %p161, %p162
      %p164 = scmp.ne.s32.totalorder %s153, %s156
      %p165 = scmp.eq.s32.totalorder %s24, 1
      %p166 = por %p164, %p165
      %p167 = scmp.ne.s32.totalorder %s156, %s157
      %p168 = scmp.eq.s32.totalorder %s24, 0
      %p169 = por %p167, %p168
      %p170 = scmp.ne.s32.totalorder %s156, %s157
      %p171 = scmp.eq.s32.totalorder %s25, 1
      %p172 = por %p170, %p171
      %p174 = scmp.ne.s32.totalorder %s157, %s173
      %p175 = scmp.eq.s32.totalorder %s25, 0
      %p176 = por %p174, %p175
      %p177 = scmp.le.s32.totalorder 1, %s19
      %p178 = scmp.lt.s32.totalorder %s19, 3
      %p179 = pnand %p177, %p178
      %p180 = pneg %p179
      // Predicated region
      $region9: #{tpu_custom_call.1} parent=5 // pred_check
        _
      $region10: #{tpu_custom_call.1} parent=5 // pred_check_branch
        %182 = sbr.rel (%p179) target = $region12
      $region11: #{tpu_custom_call.1} parent=5 // pred_region
        %s183 = ssub.s32 %s19, 1
        // Predicated region
        $region13: #{tpu_custom_call.1} parent=11 // pred_check
          %p184 = pneg %p52
        $region14: #{tpu_custom_call.1} parent=11 // pred_check_branch
          %186 = sbr.rel (%p184) target = $region16
        $region15: #{tpu_custom_call.1} parent=11 // pred_region
          %s188 = ssub.s32 16, 16
          %189 = vsyncadd [#allocation6], %s188
          %192 = dma.hbm_to_smem %s0, 16, [#allocation3], [#allocation6]
        $region16: #{tpu_custom_call.1} parent=11 // pred_fallthru
          _
        // Predicated region
        $region17: #{tpu_custom_call.1} parent=11 // pred_check
          %p193 = pneg %p101
        $region18: #{tpu_custom_call.1} parent=11 // pred_check_branch
          %195 = sbr.rel (%p193) target = $region20
        $region19: #{tpu_custom_call.1} parent=11 // pred_region
          %s197 = ssub.s32 1024, 1024
          %198 = vsyncadd [#allocation9], %s197
          %s199 = sshll.u32 [#allocation8], 4
          %s200 = int_to_ptr.vmem [resolvable:$true] %s199
          %205 = dma.hbm_to_vmem [thread:$0]  %s2, 1024, %s200, [#allocation9], 256, 256, 16
        $region20: #{tpu_custom_call.1} parent=11 // pred_fallthru
          _
        // Predicated region
        $region21: #{tpu_custom_call.1} parent=11 // pred_check
          %p206 = pneg %p122
        $region22: #{tpu_custom_call.1} parent=11 // pred_check_branch
          %208 = sbr.rel (%p206) target = $region24
        $region23: #{tpu_custom_call.1} parent=11 // pred_region
          _
        $region24: #{tpu_custom_call.1} parent=11 // pred_fallthru
          _
        // Predicated region
        $region25: #{tpu_custom_call.1} parent=11 // pred_check
          %p209 = pneg %p143
        $region26: #{tpu_custom_call.1} parent=11 // pred_check_branch
          %211 = sbr.rel (%p209) target = $region28
        $region27: #{tpu_custom_call.1} parent=11 // pred_region
          %s213 = ssub.s32 2048, 2048
          %214 = vsyncadd [#allocation9], %s213
          %s215 = sshll.u32 [#allocation10], 4
          %s216 = int_to_ptr.vmem [resolvable:$true] %s215
          %221 = dma.hbm_to_vmem [thread:$0]  %s4, 2048, %s216, [#allocation9], 128, 128, 8
        $region28: #{tpu_custom_call.1} parent=11 // pred_fallthru
          _
      $region12: #{tpu_custom_call.1} parent=5 // pred_fallthru
        _
      %p222 = scmp.lt.s32.totalorder %s19, 2
      // Predicated region
      $region29: #{tpu_custom_call.1} parent=5 // pred_check
        %p223 = pneg %p222
      $region30: #{tpu_custom_call.1} parent=5 // pred_check_branch
        %225 = sbr.rel (%p223) target = $region32
      $region31: #{tpu_custom_call.1} parent=5 // pred_region
        // Predicated region
        $region33: #{tpu_custom_call.1} parent=31 // pred_check
          %p226 = pneg %p74
        $region34: #{tpu_custom_call.1} parent=31 // pred_check_branch
          %228 = sbr.rel (%p226) target = $region36
        $region35: #{tpu_custom_call.1} parent=31 // pred_region
          %s229 = sand.u32 %s64, 1
          %s230 = scalar_lea.sflag [#allocation4], %s229
          %s231 = sand.u32 %s64, 1
          %s232 = smul.addr %s231, 24
          %s233 = scalar_lea.vmem [#allocation7], %s232
          %s234 = smul.u32 3, %s27
          %s236 = ssub.s32 384, 384
          %237 = vsyncadd %s230, %s236
          %s238 = smul.addr %s234, 2
          %s239 = sadd.s32 %s26, %s238
          %s240 = smul.addr %s239, 128
          %s241 = scalar_lea.hbm %s1, %s240
          %s242 = sshll.u32 %s233, 4
          %s243 = int_to_ptr.vmem [resolvable:$true] %s242
          %248 = dma.hbm_to_vmem [thread:$0]  %s241, 384, %s243, %s230, 256, 128, 8
        $region36: #{tpu_custom_call.1} parent=31 // pred_fallthru
          _
      $region32: #{tpu_custom_call.1} parent=5 // pred_fallthru
        _
      %p249 = scmp.le.s32.totalorder 1, %s19
      %p250 = scmp.lt.s32.totalorder %s19, 3
      %p251 = pnand %p249, %p250
      %p252 = pneg %p251
      // Predicated region
      $region37: #{tpu_custom_call.1} parent=5 // pred_check
        _
      $region38: #{tpu_custom_call.1} parent=5 // pred_check_branch
        %254 = sbr.rel (%p251) target = $region40
      $region39: #{tpu_custom_call.1} parent=5 // pred_region
        %s255 = ssub.s32 %s19, 1
        // Predicated region
        $region41: #{tpu_custom_call.1} parent=39 // pred_check
          %p256 = pneg %p52
        $region42: #{tpu_custom_call.1} parent=39 // pred_check_branch
          %258 = sbr.rel (%p256) target = $region44
        $region43: #{tpu_custom_call.1} parent=39 // pred_region
          %259 = dma.done [#allocation6], 16
        $region44: #{tpu_custom_call.1} parent=39 // pred_fallthru
          _
        %s260 = sand.u32 %s67, 1
        %s261 = scalar_lea.sflag [#allocation4], %s260
        %s262 = sand.u32 %s67, 1
        %s263 = smul.addr %s262, 24
        %s264 = scalar_lea.vmem [#allocation7], %s263
        // Predicated region
        $region45: #{tpu_custom_call.1} parent=39 // pred_check
          %p265 = pneg %p80
        $region46: #{tpu_custom_call.1} parent=39 // pred_check_branch
          %267 = sbr.rel (%p265) target = $region48
        $region47: #{tpu_custom_call.1} parent=39 // pred_region
          %268 = dma.done %s261, 384
        $region48: #{tpu_custom_call.1} parent=39 // pred_fallthru
          _
        // Predicated region
        $region49: #{tpu_custom_call.1} parent=39 // pred_check
          %p269 = pneg %p101
        $region50: #{tpu_custom_call.1} parent=39 // pred_check_branch
          %271 = sbr.rel (%p269) target = $region52
        $region51: #{tpu_custom_call.1} parent=39 // pred_region
          %272 = dma.done [#allocation9], 1024
        $region52: #{tpu_custom_call.1} parent=39 // pred_fallthru
          _
        // Predicated region
        $region53: #{tpu_custom_call.1} parent=39 // pred_check
          %p273 = pneg %p143
        $region54: #{tpu_custom_call.1} parent=39 // pred_check_branch
          %275 = sbr.rel (%p273) target = $region56
        $region55: #{tpu_custom_call.1} parent=39 // pred_region
          %276 = dma.done [#allocation9], 2048
        $region56: #{tpu_custom_call.1} parent=39 // pred_fallthru
          _
        %277 = sfence
        %p278 = pneg %p52
        %p279 = pneg %p49
        %s280 = sand.u32 %s67, 1
        %s281 = scalar_lea.sflag [#allocation4], %s280
        %s282 = sand.u32 %s67, 1
        %s283 = smul.addr %s282, 24
        %s284 = scalar_lea.vmem [#allocation7], %s283
        %p285 = pneg %p80
        %p286 = pneg %p77
        %p287 = pneg %p101
        %p288 = pneg %p98
        %p289 = pneg %p122
        %p290 = pneg %p119
        %p291 = pneg %p143
        %p292 = pneg %p140
        %p293 = pneg %p169
        %p294 = pneg %p166
        %s295 = sand.u32 %s156, 1
        %s296 = scalar_lea.sflag [#allocation5], %s295
        %s297 = sand.u32 %s156, 1
        %s298 = smul.addr %s297, 8
        %s299 = scalar_lea.vmem [#allocation11], %s298
        %s300 = smul.u32 3, %s29
        %s301 = smul.u32 %s29, 3
        %s302 = sld [smem:[#allocation3 + %s301]]
        %v303 = vld [vmem:[%s264] sm:$0xff]
        %v304 = vstv %s302
        %v305 = vmul.f32 %v304, %v303
        %s306 = sadd.s32 %s301, 1
        %s307 = sld [smem:[#allocation3 + %s306]]
        %s308 = scalar_lea.vmem %s264, 8 [#allocation7]
        %v309 = vld [vmem:[%s308] sm:$0xff]
        %v310 = vstv %s307
        %v311 = vmul.f32 %v310, %v309
        %v312 = vadd.f32 %v305, %v311
        %s313 = sadd.s32 %s301, 2
        %s314 = sld [smem:[#allocation3 + %s313]]
        %s315 = scalar_lea.vmem %s264, 16 [#allocation7]
        %v316 = vld [vmem:[%s315] sm:$0xff]
        %v317 = vstv %s314
        %v318 = vmul.f32 %v317, %v316
        %v319 = vadd.f32 %v312, %v318
        %p320 = scmp.eq.s32.totalorder %s29, 0
        // Predicated region
        $region57: #{tpu_custom_call.1} parent=39 // pred_check
          %p321 = pneg %p320
        $region58: #{tpu_custom_call.1} parent=39 // pred_check_branch
          %323 = sbr.rel (%p321) target = $region60
        $region59: #{tpu_custom_call.1} parent=39 // pred_region
          %vm324 = vcmask 261120
          %325 = vst.msk [vmem:[#allocation2] sm:$0xff] %vm324, %v319
        $region60: #{tpu_custom_call.1} parent=39 // pred_fallthru
          _
        %p326 = scmp.ne.s32.totalorder %s29, 0
        // Predicated region
        $region61: #{tpu_custom_call.1} parent=39 // pred_check
          %p327 = pneg %p326
        $region62: #{tpu_custom_call.1} parent=39 // pred_check_branch
          %329 = sbr.rel (%p327) target = $region64
        $region63: #{tpu_custom_call.1} parent=39 // pred_region
          %v330 = vld [vmem:[#allocation2] sm:$0xff]
          %v331 = vadd.f32 %v330, %v319
          %vm332 = vcmask 261120
          %333 = vst.msk [vmem:[#allocation2] sm:$0xff] %vm332, %v331
        $region64: #{tpu_custom_call.1} parent=39 // pred_fallthru
          _
        // Predicated region
        $region65: #{tpu_custom_call.1} parent=39 // pred_check
          %p334 = pneg %p320
        $region66: #{tpu_custom_call.1} parent=39 // pred_check_branch
          %336 = sbr.rel (%p334) target = $region68
        $region67: #{tpu_custom_call.1} parent=39 // pred_region
          %v337 = vld [vmem:[#allocation2] sm:$0xff]
          %v338 = vld [vmem:[#allocation8] sm:$0xff]
          %v339 = vld [vmem:[#allocation8 + $0x8] sm:$0xff]
          %v340 = vld [vmem:[#allocation8 + $0x10] sm:$0xff]
          %v341 = vld [vmem:[#allocation8 + $0x18] sm:$0xff]
          %v342 = vld [vmem:[#allocation8 + $0x20] sm:$0xff]
          %v343 = vld [vmem:[#allocation8 + $0x28] sm:$0xff]
          %v344 = vld [vmem:[#allocation8 + $0x30] sm:$0xff]
          %v345 = vld [vmem:[#allocation8 + $0x38] sm:$0xff]
          %v346 = vld [vmem:[%s3] sm:$0x3]
          %v348 = vlaneseq
          %v349 = vshrl.u32 %v348, 7
          %v350 = vsub.s32 0, %v349
          %v351 = vrot.slane %v346, %v350
          %v352 = vlaneseq
          %v353 = vshrl.u32 %v352, 7
          %v354 = vsub.s32 1, %v353
          %v355 = vrot.slane %v346, %v354
          %vm358 = vcmask 261120
          %v360 = vsel %vm358, %v337, 0
          %362 = vmatprep.subr.mxu0 %v339
          %363 = vmatpush1.msra.mxu0 %v338
          %364 = vmatprep.subr.mxu0 %v341
          %365 = vmatpush1.msra.mxu0 %v340
          %366 = vmatprep.subr.mxu0 %v343
          %367 = vmatpush1.msra.mxu0 %v342
          %368 = vmatprep.subr.mxu0 %v345
          %369 = vmatpush1.msra.mxu0 %v344
          %370 = vmatprep.subr.mxu0 0.0
          %371 = vmatpush1.msra.mxu0 0.0
          %372 = vmatprep.subr.mxu0 0.0
          %373 = vmatpush1.msra.mxu0 0.0
          %374 = vmatprep.subr.mxu0 0.0
          %375 = vmatpush1.msra.mxu0 0.0
          %376 = vmatprep.subr.mxu0 0.0
          %377 = vmatpush1.msra.mxu0 0.0
          %378 = vmatprep.subr.mxu0 0.0
          %379 = vmatpush1.msra.mxu0 0.0
          %380 = vmatprep.subr.mxu0 0.0
          %381 = vmatpush1.msra.mxu0 0.0
          %382 = vmatprep.subr.mxu0 0.0
          %383 = vmatpush1.msra.mxu0 0.0
          %384 = vmatprep.subr.mxu0 0.0
          %385 = vmatpush1.msra.mxu0 0.0
          %386 = vmatprep.subr.mxu0 0.0
          %387 = vmatpush1.msra.mxu0 0.0
          %388 = vmatprep.subr.mxu0 0.0
          %389 = vmatpush1.msra.mxu0 0.0
          %390 = vmatprep.subr.mxu0 0.0
          %391 = vmatpush1.msra.mxu0 0.0
          %392 = vmatprep.subr.mxu0 0.0
          %393 = vmatpush1.msra.mxu0 0.0
          %394 = vmatprep.subr.mxu0 0.0
          %395 = vmatpush1.msra.mxu0 0.0
          %396 = vmatprep.subr.mxu0 0.0
          %397 = vmatpush1.msra.mxu0 0.0
          %398 = vmatprep.subr.mxu0 0.0
          %399 = vmatpush1.msra.mxu0 0.0
          %400 = vmatprep.subr.mxu0 0.0
          %401 = vmatpush1.msra.mxu0 0.0
          %402 = vmatprep.subr.mxu0 0.0
          %403 = vmatpush1.msra.mxu0 0.0
          %404 = vmatprep.subr.mxu0 0.0
          %405 = vmatpush1.msra.mxu0 0.0
          %406 = vmatprep.subr.mxu0 0.0
          %407 = vmatpush1.msra.mxu0 0.0
          %408 = vmatprep.subr.mxu0 0.0
          %409 = vmatpush1.msra.mxu0 0.0
          %410 = vmatprep.subr.mxu0 0.0
          %411 = vmatpush1.msra.mxu0 0.0
          %412 = vmatprep.subr.mxu0 0.0
          %413 = vmatpush1.msra.mxu0 0.0
          %414 = vmatprep.subr.mxu0 0.0
          %415 = vmatpush1.msra.mxu0 0.0
          %416 = vmatprep.subr.mxu0 0.0
          %417 = vmatpush1.msra.mxu0 0.0
          %418 = vmatprep.subr.mxu0 0.0
          %419 = vmatpush1.msra.mxu0 0.0
          %420 = vmatprep.subr.mxu0 0.0
          %421 = vmatpush1.msra.mxu0 0.0
          %422 = vmatprep.subr.mxu0 0.0
          %423 = vmatpush1.msra.mxu0 0.0
          %424 = vmatprep.subr.mxu0 0.0
          %425 = vmatpush1.msra.mxu0 0.0
          %426 = vmatprep.mubr.f32.mxu0 0.0
          %427 = vmatmul.mubr.f32.gmra.mrb[0].mxu0 %v360
          %v428 = vpop.f32.mrb[0].mxu0
          %v429 = vadd.f32 %v351, %v428
          %v430 = vpop.f32.mrb[0].mxu0
          %v431 = vadd.f32 %v355, %v430
          %432 = vdwg.mxu0
          %vm433 = vcmp.gt.f32.partialorder %v429, 0.0
          %vm434 = vcmp.gt.f32.partialorder %v431, 0.0
          %v435 = vmul.f32 %v429, 0.01
          %v436 = vmul.f32 %v431, 0.01
          %v437 = vsel %vm433, %v429, %v435
          %v438 = vsel %vm434, %v431, %v436
          %v439 = vld [vmem:[#allocation10] sm:$0xff]
          %v440 = vld [vmem:[#allocation10 + $0x8] sm:$0xff]
          %v441 = vld [vmem:[#allocation10 + $0x10] sm:$0xff]
          %v442 = vld [vmem:[#allocation10 + $0x18] sm:$0xff]
          %v443 = vld [vmem:[#allocation10 + $0x20] sm:$0xff]
          %v444 = vld [vmem:[#allocation10 + $0x28] sm:$0xff]
          %v445 = vld [vmem:[#allocation10 + $0x30] sm:$0xff]
          %v446 = vld [vmem:[#allocation10 + $0x38] sm:$0xff]
          %v447 = vld [vmem:[#allocation10 + $0x40] sm:$0xff]
          %v448 = vld [vmem:[#allocation10 + $0x48] sm:$0xff]
          %v449 = vld [vmem:[#allocation10 + $0x50] sm:$0xff]
          %v450 = vld [vmem:[#allocation10 + $0x58] sm:$0xff]
          %v451 = vld [vmem:[#allocation10 + $0x60] sm:$0xff]
          %v452 = vld [vmem:[#allocation10 + $0x68] sm:$0xff]
          %v453 = vld [vmem:[#allocation10 + $0x70] sm:$0xff]
          %v454 = vld [vmem:[#allocation10 + $0x78] sm:$0xff]
          %455 = vmatprep.subr.mxu0 0.0
          %456 = vmatpush1.msra.mxu0 %v439
          %457 = vmatprep.subr.mxu0 0.0
          %458 = vmatpush1.msra.mxu0 %v440
          %459 = vmatprep.subr.mxu0 0.0
          %460 = vmatpush1.msra.mxu0 %v441
          %461 = vmatprep.subr.mxu0 0.0
          %462 = vmatpush1.msra.mxu0 %v442
          %463 = vmatprep.subr.mxu0 0.0
          %464 = vmatpush1.msra.mxu0 %v443
          %465 = vmatprep.subr.mxu0 0.0
          %466 = vmatpush1.msra.mxu0 %v444
          %467 = vmatprep.subr.mxu0 0.0
          %468 = vmatpush1.msra.mxu0 %v445
          %469 = vmatprep.subr.mxu0 0.0
          %470 = vmatpush1.msra.mxu0 %v446
          %471 = vmatprep.subr.mxu0 0.0
          %472 = vmatpush1.msra.mxu0 %v447
          %473 = vmatprep.subr.mxu0 0.0
          %474 = vmatpush1.msra.mxu0 %v448
          %475 = vmatprep.subr.mxu0 0.0
          %476 = vmatpush1.msra.mxu0 %v449
          %477 = vmatprep.subr.mxu0 0.0
          %478 = vmatpush1.msra.mxu0 %v450
          %479 = vmatprep.subr.mxu0 0.0
          %480 = vmatpush1.msra.mxu0 %v451
          %481 = vmatprep.subr.mxu0 0.0
          %482 = vmatpush1.msra.mxu0 %v452
          %483 = vmatprep.subr.mxu0 0.0
          %484 = vmatpush1.msra.mxu0 %v453
          %485 = vmatprep.subr.mxu0 0.0
          %486 = vmatpush1.msra.mxu0 %v454
          %487 = vmatprep.subr.mxu0 0.0
          %488 = vmatpush1.msra.mxu0 0.0
          %489 = vmatprep.subr.mxu0 0.0
          %490 = vmatpush1.msra.mxu0 0.0
          %491 = vmatprep.subr.mxu0 0.0
          %492 = vmatpush1.msra.mxu0 0.0
          %493 = vmatprep.subr.mxu0 0.0
          %494 = vmatpush1.msra.mxu0 0.0
          %495 = vmatprep.subr.mxu0 0.0
          %496 = vmatpush1.msra.mxu0 0.0
          %497 = vmatprep.subr.mxu0 0.0
          %498 = vmatpush1.msra.mxu0 0.0
          %499 = vmatprep.subr.mxu0 0.0
          %500 = vmatpush1.msra.mxu0 0.0
          %501 = vmatprep.subr.mxu0 0.0
          %502 = vmatpush1.msra.mxu0 0.0
          %503 = vmatprep.subr.mxu0 0.0
          %504 = vmatpush1.msra.mxu0 0.0
          %505 = vmatprep.subr.mxu0 0.0
          %506 = vmatpush1.msra.mxu0 0.0
          %507 = vmatprep.subr.mxu0 0.0
          %508 = vmatpush1.msra.mxu0 0.0
          %509 = vmatprep.subr.mxu0 0.0
          %510 = vmatpush1.msra.mxu0 0.0
          %511 = vmatprep.subr.mxu0 0.0
          %512 = vmatpush1.msra.mxu0 0.0
          %513 = vmatprep.subr.mxu0 0.0
          %514 = vmatpush1.msra.mxu0 0.0
          %515 = vmatprep.subr.mxu0 0.0
          %516 = vmatpush1.msra.mxu0 0.0
          %517 = vmatprep.subr.mxu0 0.0
          %518 = vmatpush1.msra.mxu0 0.0
          %519 = vmatprep.mubr.f32.mxu0 0.0
          %520 = vmatmul.mubr.f32.gmra.mrb[0].mxu0 %v437
          %v521 = vpop.f32.mrb[0].mxu0
          %v522 = vadd.f32 0.0, %v521
          %v523 = vpop.f32.mrb[0].mxu0
          %524 = vdwg.mxu0
          %525 = vmatprep.subr.mxu0 0.0
          %526 = vmatpush1.xpose.msra.mxu0 %v522
          %527 = vmatprep.subr.mxu0 0.0
          %528 = vmatpush1.xpose.msra.mxu0 0.0
          %529 = vmatprep.subr.mxu0 0.0
          %530 = vmatpush1.xpose.msra.mxu0 0.0
          %531 = vmatprep.subr.mxu0 0.0
          %532 = vmatpush1.xpose.msra.mxu0 0.0
          %533 = vmatprep.subr.mxu0 0.0
          %534 = vmatpush1.xpose.msra.mxu0 0.0
          %535 = vmatprep.subr.mxu0 0.0
          %536 = vmatpush1.xpose.msra.mxu0 0.0
          %537 = vmatprep.subr.mxu0 0.0
          %538 = vmatpush1.xpose.msra.mxu0 0.0
          %539 = vmatprep.subr.mxu0 0.0
          %540 = vmatpush1.xpose.msra.mxu0 0.0
          %541 = vmatprep.subr.mxu0 0.0
          %542 = vmatpush1.xpose.msra.mxu0 0.0
          %543 = vmatprep.subr.mxu0 0.0
          %544 = vmatpush1.xpose.msra.mxu0 0.0
          %545 = vmatprep.subr.mxu0 0.0
          %546 = vmatpush1.xpose.msra.mxu0 0.0
          %547 = vmatprep.subr.mxu0 0.0
          %548 = vmatpush1.xpose.msra.mxu0 0.0
          %549 = vmatprep.subr.mxu0 0.0
          %550 = vmatpush1.xpose.msra.mxu0 0.0
          %551 = vmatprep.subr.mxu0 0.0
          %552 = vmatpush1.xpose.msra.mxu0 0.0
          %553 = vmatprep.subr.mxu0 0.0
          %554 = vmatpush1.xpose.msra.mxu0 0.0
          %555 = vmatprep.subr.mxu0 0.0
          %556 = vmatpush1.xpose.msra.mxu0 0.0
          %557 = vmatprep.subr.mxu0 0.0
          %558 = vmatpush1.xpose.msra.mxu0 0.0
          %559 = vmatprep.subr.mxu0 0.0
          %560 = vmatpush1.xpose.msra.mxu0 0.0
          %561 = vmatprep.subr.mxu0 0.0
          %562 = vmatpush1.xpose.msra.mxu0 0.0
          %563 = vmatprep.subr.mxu0 0.0
          %564 = vmatpush1.xpose.msra.mxu0 0.0
          %565 = vmatprep.subr.mxu0 0.0
          %566 = vmatpush1.xpose.msra.mxu0 0.0
          %567 = vmatprep.subr.mxu0 0.0
          %568 = vmatpush1.xpose.msra.mxu0 0.0
          %569 = vmatprep.subr.mxu0 0.0
          %570 = vmatpush1.xpose.msra.mxu0 0.0
          %571 = vmatprep.subr.mxu0 0.0
          %572 = vmatpush1.xpose.msra.mxu0 0.0
          %573 = vmatprep.subr.mxu0 0.0
          %574 = vmatpush1.xpose.msra.mxu0 0.0
          %575 = vmatprep.subr.mxu0 0.0
          %576 = vmatpush1.xpose.msra.mxu0 0.0
          %577 = vmatprep.subr.mxu0 0.0
          %578 = vmatpush1.xpose.msra.mxu0 0.0
          %579 = vmatprep.subr.mxu0 0.0
          %580 = vmatpush1.xpose.msra.mxu0 0.0
          %581 = vmatprep.subr.mxu0 0.0
          %582 = vmatpush1.xpose.msra.mxu0 0.0
          %583 = vmatprep.subr.mxu0 0.0
          %584 = vmatpush1.xpose.msra.mxu0 0.0
          %585 = vmatprep.subr.mxu0 0.0
          %586 = vmatpush1.xpose.msra.mxu0 0.0
          %587 = vmatprep.subr.mxu0 0.0
          %588 = vmatpush1.xpose.msra.mxu0 0.0
          %589 = vmatprep.mubr.f32.mxu0 0.0
          %590 = vmatmul.mubr.f32.gmra.mrb[0].mxu0 %v438
          %v591 = vpop.f32.mrb[0].mxu0
          %v592 = vadd.f32 0.0, %v591
          %v593 = vpop.f32.mrb[0].mxu0
          %594 = vdwg.mxu0
          %v595 = vlaneseq
          %v596 = vshrl.u32 %v595, 7
          %v597 = vlaneseq
          %v598 = vand.u32 %v597, 127
          %v599 = vadd.s32 %v596, 4294967295
          %vm600 = vcmp.le.s32.totalorder %v598, %v599
          %v601 = vsel %vm600, %v592, -inf
          %vm602 = vcmask 64512
          %603 = vst.msk [vmem:[%s299] sm:$0xff] %vm602, %v601
        $region68: #{tpu_custom_call.1} parent=39 // pred_fallthru
          _
        %s604 = sand.u32 %s156, 1
        %s605 = scalar_lea.sflag [#allocation5], %s604
        %s606 = sand.u32 %s156, 1
        %s607 = smul.addr %s606, 8
        %s608 = scalar_lea.vmem [#allocation11], %s607
        // Predicated region
        $region69: #{tpu_custom_call.1} parent=39 // pred_check
          %p609 = pneg %p166
        $region70: #{tpu_custom_call.1} parent=39 // pred_check_branch
          %611 = sbr.rel (%p609) target = $region72
        $region71: #{tpu_custom_call.1} parent=39 // pred_region
          %s613 = ssub.s32 128, 128
          %614 = vsyncadd %s605, %s613
          %s615 = smul.addr %s28, 128
          %s616 = scalar_lea.hbm %s5, %s615
          %s618 = sshll.u32 %s608, 4
          %s619 = int_to_ptr.vmem [resolvable:$true] %s618
          %621 = dma.vmem_to_hbm [thread:$0]  %s619, 128, %s616, %s605
        $region72: #{tpu_custom_call.1} parent=39 // pred_fallthru
          _
      $region40: #{tpu_custom_call.1} parent=5 // pred_fallthru
        _
      %p622 = scmp.le.s32.totalorder 2, %s19
      // Predicated region
      $region73: #{tpu_custom_call.1} parent=5 // pred_check
        %p623 = pneg %p622
      $region74: #{tpu_custom_call.1} parent=5 // pred_check_branch
        %625 = sbr.rel (%p623) target = $region76
      $region75: #{tpu_custom_call.1} parent=5 // pred_region
        %s626 = ssub.s32 %s19, 2
        // Predicated region
        $region77: #{tpu_custom_call.1} parent=75 // pred_check
          %p627 = pneg %p172
        $region78: #{tpu_custom_call.1} parent=75 // pred_check_branch
          %629 = sbr.rel (%p627) target = $region80
        $region79: #{tpu_custom_call.1} parent=75 // pred_region
          %s630 = sand.u32 %s157, 1
          %s631 = scalar_lea.sflag [#allocation5], %s630
          %s632 = sand.u32 %s157, 1
          %s633 = smul.addr %s632, 8
          %s634 = scalar_lea.vmem [#allocation11], %s633
          %635 = dma.done %s631, 128
        $region80: #{tpu_custom_call.1} parent=75 // pred_fallthru
          _
      $region76: #{tpu_custom_call.1} parent=5 // pred_fallthru
        _
    $region6: #{tpu_custom_call.1} parent=1 // loop_footer
      %s23 = sadd.s32 1, %s19
    $region7: #{tpu_custom_call.1} parent=1 // loop_footer_branch
      %18 = sbr.rel target = $region3
    $region8: #{tpu_custom_call.1} parent=1 // loop_exit
      _
    %636 = vsyncpa [#allocation4], 1
    %s637 = scalar_lea.sflag [#allocation4], 1
    %638 = vsyncpa %s637, 1
    %639 = vsyncpa [#allocation9], 1
    %640 = vsyncpa [#allocation5], 1
    %s641 = scalar_lea.sflag [#allocation5], 1
    %642 = vsyncpa %s641, 1
    %643 = vsyncpa [#allocation6], 1
    %s644 = scalar_lea.sflag [#allocation6], 1
    %645 = vsyncpa %s644, 1

</llo_original>
